<compile_context>
chip_gen: v7x
topology: tpu7x:2x2x1
jax: 0.10.0
libtpu: 0.0.40
codegen_flags: <defaults>
</compile_context>

<pallas_src>
import math

import jax
import jax.numpy as jnp
from jax.experimental import pallas as pl
from jax.experimental.pallas import tpu as pltpu


_TILE_BUDGET_BYTES = 6 << 20     # per data tile; 2 bufs * (in + out) ~ 24 MiB
_VMEM_LIMIT_BYTES = 32 << 20     # safe on v5e / v6e / v7x


def _layerscale_kernel(scale_ref, x_ref, o_ref):
    # Broadcast multiply in f32 (matches PyTorch promotion when the parameter
    # is f32 and activations are bf16), cast on store. Kernel is DMA-bound so
    # the upcast is free.
    s = scale_ref[...].astype(jnp.float32)
    x = x_ref[...].astype(jnp.float32)
    o_ref[...] = (s * x).astype(o_ref.dtype)


def _round_up(v: int, m: int) -> int:
    return -(-v // m) * m


def _pick_2d_tile(rows: int, cols: int, itemsize: int, row_mult: int,
                  col_mult: int = 128, budget: int = _TILE_BUDGET_BYTES):
    """Largest (tR, tC) tile under `budget` bytes; lane axis filled first."""
    max_cols_for_min_rows = budget // max(row_mult * itemsize, 1)
    if cols <= max_cols_for_min_rows:
        t_cols = cols                                   # full dim: always legal
    else:
        t_cols = max(col_mult, (max_cols_for_min_rows // col_mult) * col_mult)
    t_rows_cap = budget // max(t_cols * itemsize, 1)
    t_rows_cap = max(row_mult, (t_rows_cap // row_mult) * row_mult)
    t_rows = rows if rows <= t_rows_cap else t_rows_cap
    return t_rows, t_cols


def _run_2d(scale2d: jax.Array, operand: jax.Array, scale_is_row: bool) -> jax.Array:
    """out[r, c] = scale * operand[r, c] with scale broadcast along one axis."""
    rows, cols = operand.shape
    itemsize = jnp.dtype(operand.dtype).itemsize
    row_mult = max(8, 32 // itemsize)                   # 8 f32 / 16 bf16 / 32 i8

    t_rows, t_cols = _pick_2d_tile(rows, cols, itemsize, row_mult)

    # Guarantee >= 2 grid steps so v7x's 2 TensorCores split the traffic
    # (no-op on v5e/v6e).
    if pl.cdiv(rows, t_rows) * pl.cdiv(cols, t_cols) < 2:
        if rows > row_mult:
            t_rows = _round_up(pl.cdiv(rows, 2), row_mult)
        elif cols > 128:
            t_cols = _round_up(pl.cdiv(cols, 2), 128)

    grid = (pl.cdiv(rows, t_rows), pl.cdiv(cols, t_cols))

    if scale_is_row:     # scale2d: (rows, 1)  -- channel-first
        scale_spec = pl.BlockSpec((t_rows, 1), lambda r, c: (r, 0))
    else:                # scale2d: (1, cols)  -- channel-last
        scale_spec = pl.BlockSpec((1, t_cols), lambda r, c: (0, c))

    data_spec = pl.BlockSpec((t_rows, t_cols), lambda r, c: (r, c))

    return pl.pallas_call(
        _layerscale_kernel,
        out_shape=jax.ShapeDtypeStruct((rows, cols), operand.dtype),
        grid_spec=pltpu.PrefetchScalarGridSpec(
            num_scalar_prefetch=0,
            grid=grid,
            in_specs=[scale_spec, data_spec],
            out_specs=data_spec,
        ),
        compiler_params=pltpu.CompilerParams(
            dimension_semantics=("parallel", "parallel"),
            vmem_limit_bytes=_VMEM_LIMIT_BYTES,
        ),
        cost_estimate=pl.CostEstimate(
            flops=operand.size,
            transcendentals=0,
            bytes_accessed=2 * operand.size * itemsize + scale2d.size * 4,
        ),
    )(scale2d, operand)


def layer_scale(scale: jax.Array, x: jax.Array, channel_last: bool = False) -> jax.Array:
    """Pallas LayerScale forward.

    scale: (C,) learned per-channel scale (kept f32 for the multiply).
    x:     (B, C, T) if channel_last=False, else (T, B, C).
    """
    scale_f32 = scale.astype(jnp.float32)

    if channel_last:
        T, B, C = x.shape
        rows = T * B
        # Lane folding: make the last dim an unmasked multiple of 128 lanes
        # when possible (exact, free for contiguous x).
        k = math.lcm(C, 128) // C
        if k > 1 and rows % k == 0:
            operand = x.reshape(rows // k, k * C)
            scale2d = jnp.tile(scale_f32, k).reshape(1, k * C)
        else:
            operand = x.reshape(rows, C)
            scale2d = scale_f32.reshape(1, C)
        out = _run_2d(scale2d, operand, scale_is_row=False)
        return out.reshape(T, B, C)
    else:
        B, C, T = x.shape
        rows = B * C
        operand = x.reshape(rows, T)                    # contiguous -> free
        scale2d = jnp.tile(scale_f32, B).reshape(rows, 1)   # row b*C+c -> scale[c]
        out = _run_2d(scale2d, operand, scale_is_row=True)
        return out.reshape(B, C, T)


if __name__ == "__main__":
    key = jax.random.PRNGKey(0)
    k_x1, k_x2, k_x3 = jax.random.split(key, 3)
    init = 0.1  # module sets scale.data[:] = init

    # --- channel_last = False : (B, C, T), f32 ---
    B, C, T = 2, 4, 16
    scale = jnp.full((C,), init, dtype=jnp.float32)
    x = jax.random.normal(k_x1, (B, C, T), dtype=jnp.float32)
    out = jax.block_until_ready(layer_scale(scale, x, channel_last=False))
    ref = scale[:, None] * x
    assert out.shape == x.shape and out.dtype == x.dtype
    assert jnp.allclose(out, ref, atol=1e-6), "channel_last=False mismatch"

    # --- channel_last = True : (T, B, C), f32 ---
    T2, B2, C2 = 8, 2, 4
    scale2 = jnp.full((C2,), init, dtype=jnp.float32)
    x2 = jax.random.normal(k_x2, (T2, B2, C2), dtype=jnp.float32)
    out2 = jax.block_until_ready(layer_scale(scale2, x2, channel_last=True))
    ref2 = scale2 * x2
    assert out2.shape == x2.shape and out2.dtype == x2.dtype
    assert jnp.allclose(out2, ref2, atol=1e-6), "channel_last=True mismatch"

    # --- channel_last = False, bf16 activations (f32 promotion path) ---
    x3 = jax.random.normal(k_x3, (B, C, T), dtype=jnp.float32).astype(jnp.bfloat16)
    out3 = jax.block_until_ready(layer_scale(scale, x3, channel_last=False))
    ref3 = (scale[:, None] * x3.astype(jnp.float32)).astype(jnp.bfloat16)
    assert out3.shape == x3.shape and out3.dtype == x3.dtype
    assert jnp.allclose(out3.astype(jnp.float32), ref3.astype(jnp.float32),
                        atol=1e-2), "bf16 mismatch"

    print("KERNEL_OK")
</pallas_src>

<mosaic_0001>
module attributes {stable_mosaic.version = 11 : i64} {
  func.func @_layerscale_kernel(%arg0: i32, %arg1: i32, %arg2: memref<8x1xf32, #tpu.memory_space<vmem>>, %arg3: memref<8x16xf32, #tpu.memory_space<vmem>>, %arg4: memref<8x16xf32, #tpu.memory_space<vmem>>) attributes {dimension_semantics = [#tpu.dimension_semantics<parallel>, #tpu.dimension_semantics<parallel>], iteration_bounds = array<i64: 1, 1>, scalar_prefetch = 0 : i64, scratch_operands = 0 : i64, tpu.core_type = #tpu.core_type<tc>, window_params = [{transform_indices = @transform_0, window_bounds = array<i64: 8, 1>}, {transform_indices = @transform_1, window_bounds = array<i64: 8, 16>}, {transform_indices = @transform_2, window_bounds = array<i64: 8, 16>}]} {
    %c0 = arith.constant 0 : index
    %c0_0 = arith.constant 0 : index
    %0 = vector.load %arg2[%c0, %c0_0] : memref<8x1xf32, #tpu.memory_space<vmem>>, vector<8x1xf32>
    %c0_1 = arith.constant 0 : index
    %c0_2 = arith.constant 0 : index
    %1 = vector.load %arg3[%c0_1, %c0_2] : memref<8x16xf32, #tpu.memory_space<vmem>>, vector<8x16xf32>
    %2 = vector.broadcast %0 : vector<8x1xf32> to vector<8x16xf32>
    %3 = arith.mulf %2, %1 : vector<8x16xf32>
    %c0_3 = arith.constant 0 : index
    %c0_4 = arith.constant 0 : index
    %4 = vector.load %arg4[%c0_3, %c0_4] : memref<8x16xf32, #tpu.memory_space<vmem>>, vector<8x16xf32>
    tpu.vector_store %arg4[%c0_3, %c0_4], %3 {strides = array<i32>} : memref<8x16xf32, #tpu.memory_space<vmem>>, vector<8x16xf32>,
    return
  }
  func.func @transform_0(%arg0: i32, %arg1: i32) -> (i32, i32) {
    %c0_i32 = arith.constant 0 : i32
    %c0_i32_0 = arith.constant 0 : i32
    return %arg0, %c0_i32 : i32, i32
  }
  func.func @transform_1(%arg0: i32, %arg1: i32) -> (i32, i32) {
    %c0_i32 = arith.constant 0 : i32
    return %arg0, %arg1 : i32, i32
  }
  func.func @transform_2(%arg0: i32, %arg1: i32) -> (i32, i32) {
    %c0_i32 = arith.constant 0 : i32
    return %arg0, %arg1 : i32, i32
  }
}

</mosaic_0001>

<llo_original>
// kernel: tpu_custom_call.1
$region0: #{tpu_custom_call.1}
  #allocation0 [shape = 'u32[]', space=smem, size = 0x4, offset = 0x4, fixed_abs, tag = 'smem constant byte address 0x4 - core index']
  #allocation1 [shape = 'u32[144,128]{1,0:T(1,128)}', space=vmem, size = 0x12000, scoped, tag = 'internal scratch']
  %s0 = inlined_call_operand.vmem [shape: f32[8,1], index: 0, kind: input, shape index: {}]
  %s1 = inlined_call_operand.vmem [shape: f32[8,16], index: 1, kind: input, shape index: {}]
  %s2 = inlined_call_operand.hbm [shape: f32[8,16], index: 2, kind: output, shape index: {}]
  %s3 = sld [smem:[#allocation0]]
  $region18: #{tpu_custom_call.1} parent=0
    _
  %s5 = ssub.s32 1, %s3
  %s6 = scalar_select 0, %s5, %s3
  $region1: #{tpu_custom_call.1} parent=0
    #allocation2 [shape = 'u8[4096]{0}', space=vmem, size = 0x1000, scoped, tag = 'output window, operand 0, single buffered']
    #allocation3 [shape = 's32[1]{0}', space=sflag, size = 0x4, scoped, tag = 'scoped memory for tpu_custom_call.1']
    %7 = vsyncpa [#allocation3], 0
    // Predicated region
    $region2: #{tpu_custom_call.1} parent=1 // pred_check
      _
    $region3: #{tpu_custom_call.1} parent=1 // pred_check_branch
      %9 = sbr.rel (0) target = $region5
    $region4: #{tpu_custom_call.1} parent=1 // pred_region
      _
    $region5: #{tpu_custom_call.1} parent=1 // pred_fallthru
      _
    // Predicated region
    $region6: #{tpu_custom_call.1} parent=1 // pred_check
      _
    $region7: #{tpu_custom_call.1} parent=1 // pred_check_branch
      %11 = sbr.rel (0) target = $region9
    $region8: #{tpu_custom_call.1} parent=1 // pred_region
      _
    $region9: #{tpu_custom_call.1} parent=1 // pred_fallthru
      _
    %v12 = vld [vmem:[%s0] sm:$0xff]
    %v13 = vld [vmem:[%s1] sm:$0xff]
    %15 = vset.pattern.permute.xlu0 0
    %16 = vperm.xlu0 %15, %v12
    %v17 = vpop.permute.xlu0 %16
    %v19 = vmul.f32 %v17, %v13
    %vm20 = vcmask 130048
    %21 = vst.msk [vmem:[#allocation2] sm:$0xff] %vm20, %v19
    // Predicated region
    $region10: #{tpu_custom_call.1} parent=1 // pred_check
      _
    $region11: #{tpu_custom_call.1} parent=1 // pred_check_branch
      %23 = sbr.rel (0) target = $region13
    $region12: #{tpu_custom_call.1} parent=1 // pred_region
      %s25 = ssub.s32 128, 128
      %26 = vsyncadd [#allocation3], %s25
      %s28 = sshll.u32 [#allocation2], 4
      %s29 = int_to_ptr.vmem [resolvable:$true] %s28
      %31 = dma.vmem_to_hbm [thread:$0]  %s29, 128, %s2, [#allocation3]
    $region13: #{tpu_custom_call.1} parent=1 // pred_fallthru
      _
    // Predicated region
    $region14: #{tpu_custom_call.1} parent=1 // pred_check
      _
    $region15: #{tpu_custom_call.1} parent=1 // pred_check_branch
      %33 = sbr.rel (0) target = $region17
    $region16: #{tpu_custom_call.1} parent=1 // pred_region
      %34 = dma.done [#allocation3], 128
    $region17: #{tpu_custom_call.1} parent=1 // pred_fallthru
      _
    %35 = vsyncpa [#allocation3], 1

</llo_original>
